<compile_context>
chip_gen: v5e
topology: v5e:2x2
jax: 0.10.0
libtpu: 0.0.40
codegen_flags: <defaults>
</compile_context>

<pallas_src>
import jax
import jax.numpy as jnp
from jax import lax
from jax.experimental import pallas as pl
from jax.experimental.pallas import tpu as pltpu


# ----------------------------- Pallas kernel --------------------------------
def gnn_fused_kernel(x_ref, a_hat_ref, w_gcn_ref, b_gcn_ref, w_gat_ref, b_gat_ref,
                     o_ref, x_scr):
    layer = pl.program_id(0)
    last = pl.num_programs(0) - 1
    f32, bf16 = jnp.float32, jnp.bfloat16

    # First layer: seed the carried activation from the (padded) node features.
    @pl.when(layer == 0)
    def _():
        x_scr[...] = x_ref[...]

    a_hat = a_hat_ref[...]                 # (N, N) f32, fetched once for all layers
    x = x_scr[...]                         # (N, D_in) f32, carried in VMEM

    # ---- GCNConv + relu:  g = relu(A_hat @ (x W_gcn) + b_gcn) ----------------
    z = jnp.dot(x.astype(bf16), w_gcn_ref[...].astype(bf16),
                preferred_element_type=f32)
    g = jnp.dot(a_hat.astype(bf16), z.astype(bf16),
                preferred_element_type=f32) + b_gcn_ref[...]
    g = jnp.maximum(g, 0.0)

    # ---- GATConv (as in the reference): h = g W_gat + b, dot-product scores --
    h = jnp.dot(g.astype(bf16), w_gat_ref[...].astype(bf16),
                preferred_element_type=f32) + b_gat_ref[...]
    h_bf = h.astype(bf16)

    # alpha_ij = leaky_relu(<h_i, h_j>, 0.2) on graph edges (incl. self loops)
    s = lax.dot_general(h_bf, h_bf, (((1,), (1,)), ((), ())),
                        preferred_element_type=f32)          # (N, N) = h @ h^T
    s = jnp.where(s >= 0.0, s, 0.2 * s)                      # leaky_relu, f32 VPU
    s = jnp.where(a_hat > 0.0, s, f32(-1e30))                # mask derived in-kernel

    # masked row-softmax; masked entries underflow to exp(-1e30-max) == 0,
    # so no extra "* mask" multiply is needed.
    row_max = jnp.max(s, axis=-1, keepdims=True)
    p = jnp.exp(s - row_max)
    denom = jnp.sum(p, axis=-1, keepdims=True)
    # self-loops guarantee denom >= 1; the clamp is a cheap robustness guard.
    alpha = p * pl.reciprocal(jnp.maximum(denom, 1e-20), approx=True)

    # out_i = sum_j alpha_ij * h_j   (== scatter_add of x_j * alpha by row)
    out = jnp.dot(alpha.astype(bf16), h_bf, preferred_element_type=f32)  # (N, Dgat)

    d = out.shape[1]

    # Intermediate layers: torch.cat([out, out], -1) is algebraically folded into
    # the next layer's packed W_gcn, so we only carry `out` itself.
    @pl.when(layer < last)
    def _():
        x_scr[:, :d] = out

    # Final layer: materialize torch.cat([out, out], dim=-1) with two slice
    # stores (no concat temp).
    @pl.when(layer == last)
    def _():
        o_ref[:, :d] = out
        o_ref[:, d:] = out


def gnn_fused(x_pad, a_hat, w_gcn, b_gcn, w_gat, b_gat):
    n, d_in = x_pad.shape
    num_layers, _, d_gcn = w_gcn.shape
    d_gat = w_gat.shape[2]

    const2 = lambda l: (0, 0)          # resident across the layer axis (one DMA)
    stack3 = lambda l: (l, 0, 0)       # per-layer weight slice

    # Scoped-VMEM cap sized to the fused working set (operands + NxN score
    # temporaries, double-buffered), clamped to sane bounds on all generations.
    nbytes = 4 * (x_pad.size + 4 * a_hat.size + n * d_in + n * 2 * d_gat
                  + w_gcn.size + b_gcn.size + w_gat.size + b_gat.size)
    vmem_limit = min(max(16 * 1024 * 1024, 2 * int(nbytes)), 32 * 1024 * 1024)

    return pl.pallas_call(
        gnn_fused_kernel,
        out_shape=jax.ShapeDtypeStruct((n, 2 * d_gat), jnp.float32),
        grid_spec=pltpu.PrefetchScalarGridSpec(
            num_scalar_prefetch=0,
            grid=(num_layers,),
            in_specs=[
                pl.BlockSpec((n, d_in), const2),             # x (fetched once)
                pl.BlockSpec((n, n), const2),                # a_hat (fetched once)
                pl.BlockSpec((None, d_in, d_gcn), stack3),   # W_gcn[layer]
                pl.BlockSpec((None, 1, d_gcn), stack3),      # b_gcn[layer]
                pl.BlockSpec((None, d_gcn, d_gat), stack3),  # W_gat[layer]
                pl.BlockSpec((None, 1, d_gat), stack3),      # b_gat[layer]
            ],
            out_specs=pl.BlockSpec((n, 2 * d_gat), const2),
            scratch_shapes=[pltpu.VMEM((n, d_in), jnp.float32)],
        ),
        compiler_params=pltpu.CompilerParams(
            # layer l+1 depends on layer l through the VMEM scratch -> sequential
            dimension_semantics=("arbitrary",),
            vmem_limit_bytes=vmem_limit,
        ),
    )(x_pad, a_hat, w_gcn, b_gcn, w_gat, b_gat)


# ------------------------------- glue (JAX) ----------------------------------
def build_dense_graph(edge_index, num_nodes):
    """Dense GCN-normalized adjacency D^{-1/2}(A+I)D^{-1/2} (self loops added).
    The GAT neighbor mask is derived in-kernel from a_hat > 0."""
    row, col = edge_index[0], edge_index[1]
    a = jnp.zeros((num_nodes, num_nodes), jnp.float32).at[row, col].set(1.0)
    a = jnp.maximum(a, jnp.eye(num_nodes, dtype=jnp.float32))
    deg = jnp.sum(a, axis=1)
    d_inv_sqrt = 1.0 / jnp.sqrt(deg)
    return a * d_inv_sqrt[:, None] * d_inv_sqrt[None, :]


def init_params(key, n_in_dim, hidden_dim, output_dim, num_layers):
    """Deterministic synthetic parameters matching the module's layer shapes."""
    def lin(k, din, dout):
        kw, kb = jax.random.split(k)
        w = 0.1 * jax.random.normal(kw, (din, dout), jnp.float32)
        b = 0.1 * jax.random.normal(kb, (1, dout), jnp.float32)
        return w, b

    params = []
    for i in range(num_layers):
        gcn_in = n_in_dim if i == 0 else 2 * hidden_dim
        gcn_out = output_dim if i == num_layers - 1 else hidden_dim
        gat_in, gat_out = gcn_out, hidden_dim
        key, k1, k2 = jax.random.split(key, 3)
        w_gcn, b_gcn = lin(k1, gcn_in, gcn_out)
        w_gat, b_gat = lin(k2, gat_in, gat_out)
        params.append((w_gcn, b_gcn, w_gat, b_gat))
    return params


def pack_params(params, n_in_dim):
    """Stack per-layer params into padded tensors selectable by the layer grid
    index.  For layers >= 1 the cat([out, out]) duplication of the previous
    layer is folded into W_gcn (cat([o,o]) @ W == o @ (W[:d] + W[d:2d]))."""
    num_layers = len(params)
    d_gat = params[0][2].shape[1]                        # == hidden_dim, all layers
    d_gcn_max = max(w.shape[1] for (w, _, _, _) in params)
    d_in_max = max(n_in_dim, d_gat)

    w_gcn_s = jnp.zeros((num_layers, d_in_max, d_gcn_max), jnp.float32)
    b_gcn_s = jnp.zeros((num_layers, 1, d_gcn_max), jnp.float32)
    w_gat_s = jnp.zeros((num_layers, d_gcn_max, d_gat), jnp.float32)
    b_gat_s = jnp.zeros((num_layers, 1, d_gat), jnp.float32)

    for i, (w_gcn, b_gcn, w_gat, b_gat) in enumerate(params):
        if i == 0:
            w_eff = w_gcn
        else:
            assert w_gcn.shape[0] == 2 * d_gat
            w_eff = w_gcn[:d_gat] + w_gcn[d_gat:]        # fold cat([o, o]) into W
        w_gcn_s = w_gcn_s.at[i, :w_eff.shape[0], :w_eff.shape[1]].set(w_eff)
        b_gcn_s = b_gcn_s.at[i, :, :b_gcn.shape[1]].set(b_gcn)
        w_gat_s = w_gat_s.at[i, :w_gat.shape[0], :w_gat.shape[1]].set(w_gat)
        b_gat_s = b_gat_s.at[i, :, :b_gat.shape[1]].set(b_gat)
    return w_gcn_s, b_gcn_s, w_gat_s, b_gat_s, d_in_max


def gnn_forward(x, edge_index, params):
    n, n_in = x.shape
    a_hat = build_dense_graph(edge_index, n)
    w_gcn_s, b_gcn_s, w_gat_s, b_gat_s, d_in_max = pack_params(params, n_in)
    x_pad = jnp.zeros((n, d_in_max), jnp.float32).at[:, :n_in].set(x)
    out = gnn_fused(x_pad, a_hat, w_gcn_s, b_gcn_s, w_gat_s, b_gat_s)
    # TODO(synk): reference calls global_mean_pool(x, edge_index) between layers
    # with a malformed batch argument; skipped (identity).
    return out


def gnn_reference(x, edge_index, params):
    """Pure-JAX f32 reference of the same forward (unfused, explicit cat)."""
    n = x.shape[0]
    a_hat = build_dense_graph(edge_index, n)
    mask = a_hat > 0.0
    for (w_gcn, b_gcn, w_gat, b_gat) in params:
        g = jnp.maximum(a_hat @ (x @ w_gcn) + b_gcn, 0.0)
        h = g @ w_gat + b_gat
        s = h @ h.T
        s = jnp.where(s >= 0.0, s, 0.2 * s)
        s = jnp.where(mask, s, -1e30)
        p = jnp.exp(s - s.max(-1, keepdims=True))
        alpha = p / p.sum(-1, keepdims=True)
        out = alpha @ h
        x = jnp.concatenate([out, out], axis=-1)
    return x


# --------------------------------- main ---------------------------------------
if __name__ == "__main__":
    key = jax.random.PRNGKey(0)
    N = 16
    n_in_dim, hidden_dim, output_dim, num_layers = 8, 32, 32, 2

    # symmetric ring graph
    src = jnp.arange(N, dtype=jnp.int32)
    dst = (src + 1) % N
    edge_index = jnp.stack([jnp.concatenate([src, dst]),
                            jnp.concatenate([dst, src])])

    key, kx = jax.random.split(key)
    x = jax.random.normal(kx, (N, n_in_dim), jnp.float32)
    params = init_params(key, n_in_dim, hidden_dim, output_dim, num_layers)

    out = gnn_forward(x, edge_index, params)
    jax.block_until_ready(out)

    assert out.shape == (N, 2 * hidden_dim), out.shape
    assert bool(jnp.all(jnp.isfinite(out)))

    # Correctness vs. pure-JAX f32 reference (loose tol: bf16 MXU operands,
    # approx reciprocal).
    ref = gnn_reference(x, edge_index, params)
    assert bool(jnp.allclose(out, ref, rtol=1e-1, atol=1e-1)), (
        float(jnp.max(jnp.abs(out - ref))))

    print("KERNEL_OK")
</pallas_src>

<mosaic_0001>
module attributes {stable_mosaic.version = 11 : i64} {
  func.func @gnn_fused_kernel(%arg0: i32, %arg1: memref<16x32xf32, #tpu.memory_space<vmem>>, %arg2: memref<16x16xf32, #tpu.memory_space<vmem>>, %arg3: memref<1x32x32xf32, #tpu.memory_space<vmem>>, %arg4: memref<1x1x32xf32, #tpu.memory_space<vmem>>, %arg5: memref<1x32x32xf32, #tpu.memory_space<vmem>>, %arg6: memref<1x1x32xf32, #tpu.memory_space<vmem>>, %arg7: memref<16x64xf32, #tpu.memory_space<vmem>>, %arg8: memref<16x32xf32, #tpu.memory_space<vmem>>) attributes {dimension_semantics = [#tpu.dimension_semantics<arbitrary>], iteration_bounds = array<i64: 2>, scalar_prefetch = 0 : i64, scratch_operands = 1 : i64, tpu.core_type = #tpu.core_type<tc>, window_params = [{pipeline_mode = #tpu.pipeline_mode<synchronous>, transform_indices = @transform_0, window_bounds = array<i64: 16, 32>}, {pipeline_mode = #tpu.pipeline_mode<synchronous>, transform_indices = @transform_1, window_bounds = array<i64: 16, 16>}, {transform_indices = @transform_2, window_bounds = array<i64: 1, 32, 32>}, {transform_indices = @transform_3, window_bounds = array<i64: 1, 1, 32>}, {transform_indices = @transform_4, window_bounds = array<i64: 1, 32, 32>}, {transform_indices = @transform_5, window_bounds = array<i64: 1, 1, 32>}, {pipeline_mode = #tpu.pipeline_mode<synchronous>, transform_indices = @transform_6, window_bounds = array<i64: 16, 64>}]} {
    %c0_i32 = arith.constant 0 : i32
    %0 = arith.cmpi eq, %arg0, %c0_i32 : i32
    %1 = arith.extui %0 : i1 to i32
    %c0_i32_0 = arith.constant 0 : i32
    %2 = arith.cmpi ne, %1, %c0_i32_0 : i32
    scf.if %2 {
      %c0_31 = arith.constant 0 : index
      %c0_32 = arith.constant 0 : index
      %59 = vector.load %arg1[%c0_31, %c0_32] : memref<16x32xf32, #tpu.memory_space<vmem>>, vector<16x32xf32>
      %c0_33 = arith.constant 0 : index
      %c0_34 = arith.constant 0 : index
      %60 = vector.load %arg8[%c0_33, %c0_34] : memref<16x32xf32, #tpu.memory_space<vmem>>, vector<16x32xf32>
      tpu.vector_store %arg8[%c0_33, %c0_34], %59 {strides = array<i32>} : memref<16x32xf32, #tpu.memory_space<vmem>>, vector<16x32xf32>,
    } else {
    }
    %c0 = arith.constant 0 : index
    %c0_1 = arith.constant 0 : index
    %3 = vector.load %arg2[%c0, %c0_1] : memref<16x16xf32, #tpu.memory_space<vmem>>, vector<16x16xf32>
    %c0_2 = arith.constant 0 : index
    %c0_3 = arith.constant 0 : index
    %4 = vector.load %arg8[%c0_2, %c0_3] : memref<16x32xf32, #tpu.memory_space<vmem>>, vector<16x32xf32>
    %5 = arith.truncf %4 : vector<16x32xf32> to vector<16x32xbf16>
    %c0_4 = arith.constant 0 : index
    %c0_5 = arith.constant 0 : index
    %c0_6 = arith.constant 0 : index
    %6 = vector.load %arg3[%c0_4, %c0_5, %c0_6] : memref<1x32x32xf32, #tpu.memory_space<vmem>>, vector<1x32x32xf32>
    %7 = vector.shape_cast %6 : vector<1x32x32xf32> to vector<32x32xf32>
    %8 = arith.truncf %7 : vector<32x32xf32> to vector<32x32xbf16>
    %cst = arith.constant dense<0.000000e+00> : vector<16x32xf32>
    %9 = tpu.matmul %5, %8, %cst {dimension_numbers = #tpu.dot_dimension_numbers<[1], [0], [0], [1], [0, 0, 1, 1], [], []>} : vector<16x32xbf16>, vector<32x32xbf16>, vector<16x32xf32> -> vector<16x32xf32>
    %10 = arith.truncf %3 : vector<16x16xf32> to vector<16x16xbf16>
    %11 = arith.truncf %9 : vector<16x32xf32> to vector<16x32xbf16>
    %cst_7 = arith.constant dense<0.000000e+00> : vector<16x32xf32>
    %12 = tpu.matmul %10, %11, %cst_7 {dimension_numbers = #tpu.dot_dimension_numbers<[1], [0], [0], [1], [0, 0, 1, 1], [], []>} : vector<16x16xbf16>, vector<16x32xbf16>, vector<16x32xf32> -> vector<16x32xf32>
    %c0_8 = arith.constant 0 : index
    %c0_9 = arith.constant 0 : index
    %c0_10 = arith.constant 0 : index
    %13 = vector.load %arg4[%c0_8, %c0_9, %c0_10] : memref<1x1x32xf32, #tpu.memory_space<vmem>>, vector<1x1x32xf32>
    %14 = vector.shape_cast %13 : vector<1x1x32xf32> to vector<1x32xf32>
    %15 = vector.broadcast %14 : vector<1x32xf32> to vector<16x32xf32>
    %16 = arith.addf %12, %15 : vector<16x32xf32>
    %cst_11 = arith.constant 0.000000e+00 : f32
    %17 = vector.broadcast %cst_11 : f32 to vector<16x32xf32>
    %18 = arith.maximumf %16, %17 : vector<16x32xf32>
    %19 = arith.truncf %18 : vector<16x32xf32> to vector<16x32xbf16>
    %c0_12 = arith.constant 0 : index
    %c0_13 = arith.constant 0 : index
    %c0_14 = arith.constant 0 : index
    %20 = vector.load %arg5[%c0_12, %c0_13, %c0_14] : memref<1x32x32xf32, #tpu.memory_space<vmem>>, vector<1x32x32xf32>
    %21 = vector.shape_cast %20 : vector<1x32x32xf32> to vector<32x32xf32>
    %22 = arith.truncf %21 : vector<32x32xf32> to vector<32x32xbf16>
    %cst_15 = arith.constant dense<0.000000e+00> : vector<16x32xf32>
    %23 = tpu.matmul %19, %22, %cst_15 {dimension_numbers = #tpu.dot_dimension_numbers<[1], [0], [0], [1], [0, 0, 1, 1], [], []>} : vector<16x32xbf16>, vector<32x32xbf16>, vector<16x32xf32> -> vector<16x32xf32>
    %c0_16 = arith.constant 0 : index
    %c0_17 = arith.constant 0 : index
    %c0_18 = arith.constant 0 : index
    %24 = vector.load %arg6[%c0_16, %c0_17, %c0_18] : memref<1x1x32xf32, #tpu.memory_space<vmem>>, vector<1x1x32xf32>
    %25 = vector.shape_cast %24 : vector<1x1x32xf32> to vector<1x32xf32>
    %26 = vector.broadcast %25 : vector<1x32xf32> to vector<16x32xf32>
    %27 = arith.addf %23, %26 : vector<16x32xf32>
    %28 = arith.truncf %27 : vector<16x32xf32> to vector<16x32xbf16>
    %cst_19 = arith.constant dense<0.000000e+00> : vector<16x16xf32>
    %29 = tpu.matmul %28, %28, %cst_19 {dimension_numbers = #tpu.dot_dimension_numbers<[1], [1], [0], [0], [0, 0, 1, 0], [], []>} : vector<16x32xbf16>, vector<16x32xbf16>, vector<16x16xf32> -> vector<16x16xf32>
    %cst_20 = arith.constant 0.000000e+00 : f32
    %30 = vector.broadcast %cst_20 : f32 to vector<16x16xf32>
    %31 = arith.cmpf oge, %29, %30 : vector<16x16xf32>
    %cst_21 = arith.constant 2.000000e-01 : f32
    %32 = vector.broadcast %cst_21 : f32 to vector<16x16xf32>
    %33 = arith.mulf %32, %29 : vector<16x16xf32>
    %34 = arith.select %31, %29, %33 : vector<16x16xi1>, vector<16x16xf32>
    %cst_22 = arith.constant 0.000000e+00 : f32
    %35 = vector.broadcast %cst_22 : f32 to vector<16x16xf32>
    %36 = arith.cmpf ogt, %3, %35 : vector<16x16xf32>
    %cst_23 = arith.constant -1.000000e+30 : f32
    %37 = vector.broadcast %cst_23 : f32 to vector<16x16xf32>
    %38 = arith.select %36, %34, %37 : vector<16x16xi1>, vector<16x16xf32>
    %cst_24 = arith.constant dense<0xFF800000> : vector<16xf32>
    %39 = vector.multi_reduction <maximumf>, %38, %cst_24 [1] : vector<16x16xf32> to vector<16xf32>
    %40 = vector.shape_cast %39 : vector<16xf32> to vector<16x1xf32>
    %41 = vector.broadcast %40 : vector<16x1xf32> to vector<16x16xf32>
    %42 = arith.subf %38, %41 : vector<16x16xf32>
    %43 = math.exp %42 : vector<16x16xf32>
    %cst_25 = arith.constant dense<0.000000e+00> : vector<16xf32>
    %44 = vector.multi_reduction <add>, %43, %cst_25 [1] : vector<16x16xf32> to vector<16xf32>
    %45 = vector.shape_cast %44 : vector<16xf32> to vector<16x1xf32>
    %cst_26 = arith.constant 9.99999968E-21 : f32
    %46 = vector.broadcast %cst_26 : f32 to vector<16x1xf32>
    %47 = arith.maximumf %45, %46 : vector<16x1xf32>
    %48 = tpu.reciprocal %47 {approx = true} : vector<16x1xf32> -> vector<16x1xf32>
    %49 = vector.broadcast %48 : vector<16x1xf32> to vector<16x16xf32>
    %50 = arith.mulf %43, %49 : vector<16x16xf32>
    %51 = arith.truncf %50 : vector<16x16xf32> to vector<16x16xbf16>
    %cst_27 = arith.constant dense<0.000000e+00> : vector<16x32xf32>
    %52 = tpu.matmul %51, %28, %cst_27 {dimension_numbers = #tpu.dot_dimension_numbers<[1], [0], [0], [1], [0, 0, 1, 1], [], []>} : vector<16x16xbf16>, vector<16x32xbf16>, vector<16x32xf32> -> vector<16x32xf32>
    %c1_i32 = arith.constant 1 : i32
    %53 = arith.cmpi slt, %arg0, %c1_i32 : i32
    %54 = arith.extui %53 : i1 to i32
    %c0_i32_28 = arith.constant 0 : i32
    %55 = arith.cmpi ne, %54, %c0_i32_28 : i32
    scf.if %55 {
      %c0_31 = arith.constant 0 : index
      %c0_32 = arith.constant 0 : index
      %59 = vector.load %arg8[%c0_31, %c0_32] : memref<16x32xf32, #tpu.memory_space<vmem>>, vector<16x32xf32>
      tpu.vector_store %arg8[%c0_31, %c0_32], %52 {strides = array<i32>} : memref<16x32xf32, #tpu.memory_space<vmem>>, vector<16x32xf32>,
    } else {
    }
    %c1_i32_29 = arith.constant 1 : i32
    %56 = arith.cmpi eq, %arg0, %c1_i32_29 : i32
    %57 = arith.extui %56 : i1 to i32
    %c0_i32_30 = arith.constant 0 : i32
    %58 = arith.cmpi ne, %57, %c0_i32_30 : i32
    scf.if %58 {
      %c0_31 = arith.constant 0 : index
      %c0_32 = arith.constant 0 : index
      %59 = vector.load %arg7[%c0_31, %c0_32] : memref<16x64xf32, #tpu.memory_space<vmem>>, vector<16x32xf32>
      tpu.vector_store %arg7[%c0_31, %c0_32], %52 {strides = array<i32>} : memref<16x64xf32, #tpu.memory_space<vmem>>, vector<16x32xf32>,
      %c0_33 = arith.constant 0 : index
      %c32 = arith.constant 32 : index
      %60 = vector.load %arg7[%c0_33, %c32] : memref<16x64xf32, #tpu.memory_space<vmem>>, vector<16x32xf32>
      tpu.vector_store %arg7[%c0_33, %c32], %52 {strides = array<i32>} : memref<16x64xf32, #tpu.memory_space<vmem>>, vector<16x32xf32>,
    } else {
    }
    return
  }
  func.func @transform_0(%arg0: i32) -> (i32, i32) {
    %c0_i32 = arith.constant 0 : i32
    %c0_i32_0 = arith.constant 0 : i32
    %c0_i32_1 = arith.constant 0 : i32
    return %c0_i32, %c0_i32_0 : i32, i32
  }
  func.func @transform_1(%arg0: i32) -> (i32, i32) {
    %c0_i32 = arith.constant 0 : i32
    %c0_i32_0 = arith.constant 0 : i32
    %c0_i32_1 = arith.constant 0 : i32
    return %c0_i32, %c0_i32_0 : i32, i32
  }
  func.func @transform_2(%arg0: i32) -> (i32, i32, i32) {
    %c0_i32 = arith.constant 0 : i32
    %c0_i32_0 = arith.constant 0 : i32
    %c0_i32_1 = arith.constant 0 : i32
    return %arg0, %c0_i32, %c0_i32_0 : i32, i32, i32
  }
  func.func @transform_3(%arg0: i32) -> (i32, i32, i32) {
    %c0_i32 = arith.constant 0 : i32
    %c0_i32_0 = arith.constant 0 : i32
    %c0_i32_1 = arith.constant 0 : i32
    return %arg0, %c0_i32, %c0_i32_0 : i32, i32, i32
  }
  func.func @transform_4(%arg0: i32) -> (i32, i32, i32) {
    %c0_i32 = arith.constant 0 : i32
    %c0_i32_0 = arith.constant 0 : i32
    %c0_i32_1 = arith.constant 0 : i32
    return %arg0, %c0_i32, %c0_i32_0 : i32, i32, i32
  }
  func.func @transform_5(%arg0: i32) -> (i32, i32, i32) {
    %c0_i32 = arith.constant 0 : i32
    %c0_i32_0 = arith.constant 0 : i32
    %c0_i32_1 = arith.constant 0 : i32
    return %arg0, %c0_i32, %c0_i32_0 : i32, i32, i32
  }
  func.func @transform_6(%arg0: i32) -> (i32, i32) {
    %c0_i32 = arith.constant 0 : i32
    %c0_i32_0 = arith.constant 0 : i32
    %c0_i32_1 = arith.constant 0 : i32
    return %c0_i32, %c0_i32_0 : i32, i32
  }
}

</mosaic_0001>

<llo_original>
// kernel: tpu_custom_call.1
$region0: #{tpu_custom_call.1}
  #allocation0 [shape = 'u32[]', space=smem, size = 0x4, offset = 0x4, fixed_abs, tag = 'smem constant byte address 0x4 - core index']
  #allocation1 [shape = 'u32[72,128]{1,0:T(1,128)}', space=vmem, size = 0x9000, scoped, tag = 'internal scratch']
  #allocation2 [shape = 'f32[16,32]{1,0:T(8,128)}', space=vmem, size = 0x2000, scoped, tag = 'scratch operand']
  %s0 = inlined_call_operand.hbm [shape: f32[16,32], index: 0, kind: input, shape index: {}]
  %s1 = inlined_call_operand.hbm [shape: f32[16,16], index: 1, kind: input, shape index: {}]
  %s2 = inlined_call_operand.hbm [shape: f32[2,32,32], index: 2, kind: input, shape index: {}]
  %s3 = inlined_call_operand.vmem [shape: f32[2,1,32], index: 3, kind: input, shape index: {}]
  %s4 = inlined_call_operand.hbm [shape: f32[2,32,32], index: 4, kind: input, shape index: {}]
  %s5 = inlined_call_operand.vmem [shape: f32[2,1,32], index: 5, kind: input, shape index: {}]
  %s6 = inlined_call_operand.hbm [shape: f32[16,64], index: 6, kind: output, shape index: {}]
  %s7 = sld [smem:[#allocation0]]
  $region85: #{tpu_custom_call.1} parent=0
    _
  %s9 = ssub.s32 1, %s7
  %s10 = scalar_select 0, %s9, %s7
  $region1: #{tpu_custom_call.1} parent=0
    #allocation3 [shape = 'u8[8192]{0}', space=vmem, size = 0x2000, scoped, tag = 'input window, operand 0, single buffered']
    #allocation4 [shape = 's32[2]{0}', space=sflag, size = 0x8, scoped, tag = 'scoped memory for tpu_custom_call.1']
    #allocation5 [shape = 's32[2]{0}', space=sflag, size = 0x8, scoped, tag = 'scoped memory for tpu_custom_call.1']
    #allocation6 [shape = 'u8[8192]{0}', space=vmem, size = 0x2000, scoped, tag = 'input window, operand 1, single buffered']
    #allocation7 [shape = 's32[1]{0}', space=sflag, size = 0x4, scoped, tag = 'scoped memory for tpu_custom_call.1']
    #allocation8 [shape = 'u8[32768]{0}', space=vmem, size = 0x8000, scoped, tag = 'input window, operand 2']
    #allocation9 [shape = 'u8[32768]{0}', space=vmem, size = 0x8000, scoped, tag = 'input window, operand 4']
    #allocation10 [shape = 'u8[8192]{0}', space=vmem, size = 0x2000, scoped, tag = 'output window, operand 0, single buffered']
    %11 = vsyncpa [#allocation4], 0
    %12 = vsyncpa [#allocation7], 0
    %13 = vsyncpa [#allocation5], 0
    loop: start=0, step=1, limit=4
    $region2: #{tpu_custom_call.1} parent=1 // loop_pre_header
      _
    $region3: #{tpu_custom_call.1} parent=1 // loop_header
      %s15 = sphi 0, %s19
      %p16 = scmp.ge.s32.totalorder %s15, 4
      %s23 = sphi 0, %s23
      %s25 = sphi 0, %s23
      %s26 = sphi 0, %s25
      %s40 = sphi 0, %s26
      %s44 = sphi 0, %s44
      %s46 = sphi 0, %s44
      %s47 = sphi 0, %s46
      %s61 = sphi 0, %s47
      %s67 = sphi 0, %s69
      %s70 = sphi 0, %s67
      %s71 = sphi 0, %s70
      %s87 = sphi 0, %s71
      %s93 = sphi 0, %s95
      %s96 = sphi 0, %s93
      %s97 = sphi 0, %s96
      %s113 = sphi 0, %s97
      %s119 = sphi 0, %s121
      %s122 = sphi 0, %s119
      %s123 = sphi 0, %s122
      %s139 = sphi 0, %s123
      %s145 = sphi 0, %s147
      %s148 = sphi 0, %s145
      %s149 = sphi 0, %s148
      %s165 = sphi 0, %s149
      %s169 = sphi 0, %s169
      %s171 = sphi 0, %s169
      %s172 = sphi 0, %s171
      %s186 = sphi 0, %s172
    $region4: #{tpu_custom_call.1} parent=1 // loop_header_branch
      %18 = sbr.rel (%p16) target = $region8
    $region5: #{tpu_custom_call.1} parent=1 // loop_body
      %s20 = ssub.s32 %s15, 1
      %s21 = ssub.s32 %s15, 2
      %s22 = sadd.s32 %s15, 1
      %s24 = sadd.s32 %s23, 1
      %p27 = scmp.eq.s32.totalorder %s15, 1
      %p28 = scmp.ne.s32.totalorder %s23, %s25
      %p29 = scmp.eq.s32.totalorder %s15, 0
      %p30 = por %p28, %p29
      %p31 = scmp.ne.s32.totalorder %s23, %s25
      %p32 = scmp.eq.s32.totalorder %s20, 1
      %p33 = por %p31, %p32
      %p34 = scmp.ne.s32.totalorder %s25, %s26
      %p35 = scmp.eq.s32.totalorder %s20, 0
      %p36 = por %p34, %p35
      %p37 = scmp.ne.s32.totalorder %s25, %s26
      %p38 = scmp.eq.s32.totalorder %s21, 1
      %p39 = por %p37, %p38
      %p41 = scmp.ne.s32.totalorder %s26, %s40
      %p42 = scmp.eq.s32.totalorder %s21, 0
      %p43 = por %p41, %p42
      %s45 = sadd.s32 %s44, 1
      %p48 = scmp.eq.s32.totalorder %s15, 1
      %p49 = scmp.ne.s32.totalorder %s44, %s46
      %p50 = scmp.eq.s32.totalorder %s15, 0
      %p51 = por %p49, %p50
      %p52 = scmp.ne.s32.totalorder %s44, %s46
      %p53 = scmp.eq.s32.totalorder %s20, 1
      %p54 = por %p52, %p53
      %p55 = scmp.ne.s32.totalorder %s46, %s47
      %p56 = scmp.eq.s32.totalorder %s20, 0
      %p57 = por %p55, %p56
      %p58 = scmp.ne.s32.totalorder %s46, %s47
      %p59 = scmp.eq.s32.totalorder %s21, 1
      %p60 = por %p58, %p59
      %p62 = scmp.ne.s32.totalorder %s47, %s61
      %p63 = scmp.eq.s32.totalorder %s21, 0
      %p64 = por %p62, %p63
      %s65 = ssub.s32 %s15, %s22
      %p66 = scmp.eq.s32.totalorder %s65, 0
      %s68 = sadd.s32 %s67, 1
      %s69 = scalar_select %p66, %s67, %s68
      %p72 = pneg %p66
      %p73 = scmp.eq.s32.totalorder %s15, 1
      %p74 = por %p72, %p73
      %p75 = scmp.ne.s32.totalorder %s67, %s70
      %p76 = scmp.eq.s32.totalorder %s15, 0
      %p77 = por %p75, %p76
      %p78 = scmp.ne.s32.totalorder %s67, %s70
      %p79 = scmp.eq.s32.totalorder %s20, 1
      %p80 = por %p78, %p79
      %p81 = scmp.ne.s32.totalorder %s70, %s71
      %p82 = scmp.eq.s32.totalorder %s20, 0
      %p83 = por %p81, %p82
      %p84 = scmp.ne.s32.totalorder %s70, %s71
      %p85 = scmp.eq.s32.totalorder %s21, 1
      %p86 = por %p84, %p85
      %p88 = scmp.ne.s32.totalorder %s71, %s87
      %p89 = scmp.eq.s32.totalorder %s21, 0
      %p90 = por %p88, %p89
      %s91 = ssub.s32 %s15, %s22
      %p92 = scmp.eq.s32.totalorder %s91, 0
      %s94 = sadd.s32 %s93, 1
      %s95 = scalar_select %p92, %s93, %s94
      %p98 = pneg %p92
      %p99 = scmp.eq.s32.totalorder %s15, 1
      %p100 = por %p98, %p99
      %p101 = scmp.ne.s32.totalorder %s93, %s96
      %p102 = scmp.eq.s32.totalorder %s15, 0
      %p103 = por %p101, %p102
      %p104 = scmp.ne.s32.totalorder %s93, %s96
      %p105 = scmp.eq.s32.totalorder %s20, 1
      %p106 = por %p104, %p105
      %p107 = scmp.ne.s32.totalorder %s96, %s97
      %p108 = scmp.eq.s32.totalorder %s20, 0
      %p109 = por %p107, %p108
      %p110 = scmp.ne.s32.totalorder %s96, %s97
      %p111 = scmp.eq.s32.totalorder %s21, 1
      %p112 = por %p110, %p111
      %p114 = scmp.ne.s32.totalorder %s97, %s113
      %p115 = scmp.eq.s32.totalorder %s21, 0
      %p116 = por %p114, %p115
      %s117 = ssub.s32 %s15, %s22
      %p118 = scmp.eq.s32.totalorder %s117, 0
      %s120 = sadd.s32 %s119, 1
      %s121 = scalar_select %p118, %s119, %s120
      %p124 = pneg %p118
      %p125 = scmp.eq.s32.totalorder %s15, 1
      %p126 = por %p124, %p125
      %p127 = scmp.ne.s32.totalorder %s119, %s122
      %p128 = scmp.eq.s32.totalorder %s15, 0
      %p129 = por %p127, %p128
      %p130 = scmp.ne.s32.totalorder %s119, %s122
      %p131 = scmp.eq.s32.totalorder %s20, 1
      %p132 = por %p130, %p131
      %p133 = scmp.ne.s32.totalorder %s122, %s123
      %p134 = scmp.eq.s32.totalorder %s20, 0
      %p135 = por %p133, %p134
      %p136 = scmp.ne.s32.totalorder %s122, %s123
      %p137 = scmp.eq.s32.totalorder %s21, 1
      %p138 = por %p136, %p137
      %p140 = scmp.ne.s32.totalorder %s123, %s139
      %p141 = scmp.eq.s32.totalorder %s21, 0
      %p142 = por %p140, %p141
      %s143 = ssub.s32 %s15, %s22
      %p144 = scmp.eq.s32.totalorder %s143, 0
      %s146 = sadd.s32 %s145, 1
      %s147 = scalar_select %p144, %s145, %s146
      %p150 = pneg %p144
      %p151 = scmp.eq.s32.totalorder %s15, 1
      %p152 = por %p150, %p151
      %p153 = scmp.ne.s32.totalorder %s145, %s148
      %p154 = scmp.eq.s32.totalorder %s15, 0
      %p155 = por %p153, %p154
      %p156 = scmp.ne.s32.totalorder %s145, %s148
      %p157 = scmp.eq.s32.totalorder %s20, 1
      %p158 = por %p156, %p157
      %p159 = scmp.ne.s32.totalorder %s148, %s149
      %p160 = scmp.eq.s32.totalorder %s20, 0
      %p161 = por %p159, %p160
      %p162 = scmp.ne.s32.totalorder %s148, %s149
      %p163 = scmp.eq.s32.totalorder %s21, 1
      %p164 = por %p162, %p163
      %p166 = scmp.ne.s32.totalorder %s149, %s165
      %p167 = scmp.eq.s32.totalorder %s21, 0
      %p168 = por %p166, %p167
      %s170 = sadd.s32 %s169, 1
      %p173 = scmp.eq.s32.totalorder %s15, 1
      %p174 = scmp.ne.s32.totalorder %s169, %s171
      %p175 = scmp.eq.s32.totalorder %s15, 0
      %p176 = por %p174, %p175
      %p177 = scmp.ne.s32.totalorder %s169, %s171
      %p178 = scmp.eq.s32.totalorder %s20, 1
      %p179 = por %p177, %p178
      %p180 = scmp.ne.s32.totalorder %s171, %s172
      %p181 = scmp.eq.s32.totalorder %s20, 0
      %p182 = por %p180, %p181
      %p183 = scmp.ne.s32.totalorder %s171, %s172
      %p184 = scmp.eq.s32.totalorder %s21, 1
      %p185 = por %p183, %p184
      %p187 = scmp.ne.s32.totalorder %s172, %s186
      %p188 = scmp.eq.s32.totalorder %s21, 0
      %p189 = por %p187, %p188
      %p190 = scmp.le.s32.totalorder 1, %s15
      %p191 = scmp.lt.s32.totalorder %s15, 3
      %p192 = pnand %p190, %p191
      %p193 = pneg %p192
      // Predicated region
      $region9: #{tpu_custom_call.1} parent=5 // pred_check
        _
      $region10: #{tpu_custom_call.1} parent=5 // pred_check_branch
        %195 = sbr.rel (%p192) target = $region12
      $region11: #{tpu_custom_call.1} parent=5 // pred_region
        %s196 = ssub.s32 %s15, 1
        // Predicated region
        $region13: #{tpu_custom_call.1} parent=11 // pred_check
          %p197 = pneg %p36
        $region14: #{tpu_custom_call.1} parent=11 // pred_check_branch
          %199 = sbr.rel (%p197) target = $region16
        $region15: #{tpu_custom_call.1} parent=11 // pred_region
          %201 = vsyncadd [#allocation4], 0
          %s202 = sshll.u32 %s0, 4
          %s203 = int_to_ptr.hbm [resolvable:$true] %s202
          %s204 = sshll.u32 [#allocation3], 4
          %s205 = int_to_ptr.vmem [resolvable:$true] %s204
          %210 = dma.hbm_to_vmem [thread:$0]  %s203, 256, %s205, [#allocation4], 128, 128, 8
        $region16: #{tpu_custom_call.1} parent=11 // pred_fallthru
          _
        // Predicated region
        $region17: #{tpu_custom_call.1} parent=11 // pred_check
          %p211 = pneg %p57
        $region18: #{tpu_custom_call.1} parent=11 // pred_check_branch
          %213 = sbr.rel (%p211) target = $region20
        $region19: #{tpu_custom_call.1} parent=11 // pred_region
          %215 = vsyncadd [#allocation7], 0
          %s216 = sshll.u32 %s1, 4
          %s217 = int_to_ptr.hbm [resolvable:$true] %s216
          %s218 = sshll.u32 [#allocation6], 4
          %s219 = int_to_ptr.vmem [resolvable:$true] %s218
          %224 = dma.hbm_to_vmem [thread:$0]  %s217, 256, %s219, [#allocation7], 128, 128, 8
        $region20: #{tpu_custom_call.1} parent=11 // pred_fallthru
          _
      $region12: #{tpu_custom_call.1} parent=5 // pred_fallthru
        _
      %p225 = scmp.lt.s32.totalorder %s15, 2
      // Predicated region
      $region21: #{tpu_custom_call.1} parent=5 // pred_check
        %p226 = pneg %p225
      $region22: #{tpu_custom_call.1} parent=5 // pred_check_branch
        %228 = sbr.rel (%p226) target = $region24
      $region23: #{tpu_custom_call.1} parent=5 // pred_region
        // Predicated region
        $region25: #{tpu_custom_call.1} parent=23 // pred_check
          %p229 = pneg %p77
        $region26: #{tpu_custom_call.1} parent=23 // pred_check_branch
          %231 = sbr.rel (%p229) target = $region28
        $region27: #{tpu_custom_call.1} parent=23 // pred_region
          %s232 = sand.u32 %s15, 1
          %s233 = scalar_lea.sflag [#allocation4], %s232
          %s234 = sand.u32 %s67, 1
          %s235 = smul.addr %s234, 32
          %s236 = scalar_lea.vmem [#allocation8], %s235
          %238 = vsyncadd %s233, 0
          %s239 = smul.addr %s15, 4
          %s240 = smul.addr %s239, 8
          %s241 = scalar_lea.hbm %s2, %s240
          %s242 = sshll.u32 %s241, 4
          %s243 = int_to_ptr.hbm [resolvable:$true] %s242
          %s244 = sshll.u32 %s236, 4
          %s245 = int_to_ptr.vmem [resolvable:$true] %s244
          %250 = dma.hbm_to_vmem [thread:$0]  %s243, 512, %s245, %s233, 128, 128, 8
        $region28: #{tpu_custom_call.1} parent=23 // pred_fallthru
          _
        // Predicated region
        $region29: #{tpu_custom_call.1} parent=23 // pred_check
          %p251 = pneg %p103
        $region30: #{tpu_custom_call.1} parent=23 // pred_check_branch
          %253 = sbr.rel (%p251) target = $region32
        $region31: #{tpu_custom_call.1} parent=23 // pred_region
          %p254 = scmp.lt.s32.totalorder %s15, 1
          %s255 = scalar_select %p254, %s15, 1
          %s256 = scalar_lea.vmem %s3, %s255
        $region32: #{tpu_custom_call.1} parent=23 // pred_fallthru
          _
        // Predicated region
        $region33: #{tpu_custom_call.1} parent=23 // pred_check
          %p257 = pneg %p129
        $region34: #{tpu_custom_call.1} parent=23 // pred_check_branch
          %259 = sbr.rel (%p257) target = $region36
        $region35: #{tpu_custom_call.1} parent=23 // pred_region
          %s260 = sand.u32 %s15, 1
          %s261 = scalar_lea.sflag [#allocation4], %s260
          %s262 = sand.u32 %s119, 1
          %s263 = smul.addr %s262, 32
          %s264 = scalar_lea.vmem [#allocation9], %s263
          %266 = vsyncadd %s261, 0
          %s267 = smul.addr %s15, 4
          %s268 = smul.addr %s267, 8
          %s269 = scalar_lea.hbm %s4, %s268
          %s270 = sshll.u32 %s269, 4
          %s271 = int_to_ptr.hbm [resolvable:$true] %s270
          %s272 = sshll.u32 %s264, 4
          %s273 = int_to_ptr.vmem [resolvable:$true] %s272
          %278 = dma.hbm_to_vmem [thread:$0]  %s271, 512, %s273, %s261, 128, 128, 8
        $region36: #{tpu_custom_call.1} parent=23 // pred_fallthru
          _
        // Predicated region
        $region37: #{tpu_custom_call.1} parent=23 // pred_check
          %p279 = pneg %p155
        $region38: #{tpu_custom_call.1} parent=23 // pred_check_branch
          %281 = sbr.rel (%p279) target = $region40
        $region39: #{tpu_custom_call.1} parent=23 // pred_region
          %p282 = scmp.lt.s32.totalorder %s15, 1
          %s283 = scalar_select %p282, %s15, 1
          %s284 = scalar_lea.vmem %s5, %s283
        $region40: #{tpu_custom_call.1} parent=23 // pred_fallthru
          _
      $region24: #{tpu_custom_call.1} parent=5 // pred_fallthru
        _
      %p285 = scmp.le.s32.totalorder 1, %s15
      %p286 = scmp.lt.s32.totalorder %s15, 3
      %p287 = pnand %p285, %p286
      %p288 = pneg %p287
      // Predicated region
      $region41: #{tpu_custom_call.1} parent=5 // pred_check
        _
      $region42: #{tpu_custom_call.1} parent=5 // pred_check_branch
        %290 = sbr.rel (%p287) target = $region44
      $region43: #{tpu_custom_call.1} parent=5 // pred_region
        %s291 = ssub.s32 %s15, 1
        // Predicated region
        $region45: #{tpu_custom_call.1} parent=43 // pred_check
          %p292 = pneg %p36
        $region46: #{tpu_custom_call.1} parent=43 // pred_check_branch
          %294 = sbr.rel (%p292) target = $region48
        $region47: #{tpu_custom_call.1} parent=43 // pred_region
          %296 = dma.done [#allocation4], 256
        $region48: #{tpu_custom_call.1} parent=43 // pred_fallthru
          _
        // Predicated region
        $region49: #{tpu_custom_call.1} parent=43 // pred_check
          %p297 = pneg %p57
        $region50: #{tpu_custom_call.1} parent=43 // pred_check_branch
          %299 = sbr.rel (%p297) target = $region52
        $region51: #{tpu_custom_call.1} parent=43 // pred_region
          %301 = dma.done [#allocation7], 256
        $region52: #{tpu_custom_call.1} parent=43 // pred_fallthru
          _
        %s302 = sand.u32 %s20, 1
        %s303 = scalar_lea.sflag [#allocation4], %s302
        %s304 = sand.u32 %s70, 1
        %s305 = smul.addr %s304, 32
        %s306 = scalar_lea.vmem [#allocation8], %s305
        // Predicated region
        $region53: #{tpu_custom_call.1} parent=43 // pred_check
          %p307 = pneg %p83
        $region54: #{tpu_custom_call.1} parent=43 // pred_check_branch
          %309 = sbr.rel (%p307) target = $region56
        $region55: #{tpu_custom_call.1} parent=43 // pred_region
          %311 = dma.done %s303, 512
        $region56: #{tpu_custom_call.1} parent=43 // pred_fallthru
          _
        %s312 = sand.u32 %s20, 1
        %s313 = scalar_lea.sflag [#allocation4], %s312
        %s314 = sand.u32 %s122, 1
        %s315 = smul.addr %s314, 32
        %s316 = scalar_lea.vmem [#allocation9], %s315
        // Predicated region
        $region57: #{tpu_custom_call.1} parent=43 // pred_check
          %p317 = pneg %p135
        $region58: #{tpu_custom_call.1} parent=43 // pred_check_branch
          %319 = sbr.rel (%p317) target = $region60
        $region59: #{tpu_custom_call.1} parent=43 // pred_region
          %321 = dma.done %s313, 512
        $region60: #{tpu_custom_call.1} parent=43 // pred_fallthru
          _
        %p322 = pneg %p36
        %p323 = pneg %p33
        %p324 = pneg %p57
        %p325 = pneg %p54
        %s326 = sand.u32 %s20, 1
        %s327 = scalar_lea.sflag [#allocation4], %s326
        %s328 = sand.u32 %s70, 1
        %s329 = smul.addr %s328, 32
        %s330 = scalar_lea.vmem [#allocation8], %s329
        %p331 = pneg %p83
        %p332 = pneg %p80
        %p333 = scmp.lt.s32.totalorder %s20, 1
        %s334 = scalar_select %p333, %s20, 1
        %s335 = scalar_lea.vmem %s3, %s334
        %p336 = pneg %p109
        %p337 = pneg %p106
        %s338 = sand.u32 %s20, 1
        %s339 = scalar_lea.sflag [#allocation4], %s338
        %s340 = sand.u32 %s122, 1
        %s341 = smul.addr %s340, 32
        %s342 = scalar_lea.vmem [#allocation9], %s341
        %p343 = pneg %p135
        %p344 = pneg %p132
        %p345 = scmp.lt.s32.totalorder %s20, 1
        %s346 = scalar_select %p345, %s20, 1
        %s347 = scalar_lea.vmem %s5, %s346
        %p348 = pneg %p161
        %p349 = pneg %p158
        %p350 = pneg %p182
        %p351 = pneg %p179
        %p352 = scmp.lt.s32.totalorder %s20, 1
        %s353 = scalar_select %p352, %s20, 1
        %s354 = scalar_lea.vmem %s3, %s353
        %p355 = scmp.lt.s32.totalorder %s20, 1
        %s356 = scalar_select %p355, %s20, 1
        %s357 = scalar_lea.vmem %s5, %s356
        %p359 = scmp.eq.s32.totalorder %s20, 0
        // Predicated region
        $region61: #{tpu_custom_call.1} parent=43 // pred_check
          %p360 = pneg %p359
        $region62: #{tpu_custom_call.1} parent=43 // pred_check_branch
          %362 = sbr.rel (%p360) target = $region64
        $region63: #{tpu_custom_call.1} parent=43 // pred_region
          %v363 = vld [vmem:[#allocation3] sm:$0xff]
          %v364 = vld [vmem:[#allocation3 + $0x8] sm:$0xff]
          %vm365 = vcmask 261120
          %366 = vst.msk [vmem:[#allocation2] sm:$0xff] %vm365, %v363
          %367 = vst.msk [vmem:[#allocation2 + $0x8] sm:$0xff] %vm365, %v364
        $region64: #{tpu_custom_call.1} parent=43 // pred_fallthru
          _
        %v368 = vld [vmem:[#allocation6] sm:$0xff]
        %v369 = vld [vmem:[#allocation6 + $0x8] sm:$0xff]
        %v370 = vld [vmem:[#allocation2] sm:$0xff]
        %v371 = vld [vmem:[#allocation2 + $0x8] sm:$0xff]
        %v372 = vpack.c.bf16 %v371, %v370
        %v373 = vld [vmem:[%s306] sm:$0xff]
        %v374 = vld [vmem:[%s306 + $0x8] sm:$0xff]
        %v375 = vld [vmem:[%s306 + $0x10] sm:$0xff]
        %v376 = vld [vmem:[%s306 + $0x18] sm:$0xff]
        %v377 = vpack.c.bf16 %v374, %v373
        %v378 = vpack.c.bf16 %v376, %v375
        %vm379 = vcmask 261120
        %v381 = vsel %vm379, %v372, 0
        %383 = vmatpush.bf16.msra.mxu0 0
        %384 = vmatpush.bf16.msra.mxu0 0
        %385 = vmatpush.bf16.msra.mxu0 0
        %386 = vmatpush.bf16.msra.mxu0 0
        %387 = vmatpush.bf16.msra.mxu0 0
        %388 = vmatpush.bf16.msra.mxu0 0
        %389 = vmatpush.bf16.msra.mxu0 %v378
        %390 = vmatpush.bf16.msra.mxu0 %v377
        %391 = vmatmul.bf16.gmra.mxu0 %v381
        %v392 = vpop.f32.mrf.mxu0
        %v393 = vadd.f32 0.0, %v392
        %v394 = vpop.f32.mrf.mxu0
        %v395 = vadd.f32 0.0, %v394
        %396 = vdwg.mxu0
        %v397 = vpack.c.bf16 %v369, %v368
        %v398 = vpack.c.bf16 %v395, %v393
        %v399 = vld [vmem:[%s354] sm:$0x1]
        %v401 = vperm.slane %v399, 0
        %vm403 = vcmask 130048
        %v405 = vsel %vm403, %v397, 0
        %407 = vmatpush.bf16.msra.mxu0 0
        %408 = vmatpush.bf16.msra.mxu0 0
        %409 = vmatpush.bf16.msra.mxu0 0
        %410 = vmatpush.bf16.msra.mxu0 0
        %411 = vmatpush.bf16.msra.mxu0 0
        %412 = vmatpush.bf16.msra.mxu0 0
        %413 = vmatpush.bf16.msra.mxu0 0
        %414 = vmatpush.bf16.msra.mxu0 %v398
        %415 = vmatmul.bf16.gmra.mxu0 %v405
        %v416 = vpop.f32.mrf.mxu0
        %v417 = vadd.f32 %v401, %v416
        %v418 = vpop.f32.mrf.mxu0
        %v419 = vadd.f32 %v401, %v418
        %420 = vdwg.mxu0
        %v421 = vmax.f32 %v417, 0.0
        %v422 = vmax.f32 %v419, 0.0
        %v423 = vpack.c.bf16 %v422, %v421
        %v424 = vld [vmem:[%s316] sm:$0xff]
        %v425 = vld [vmem:[%s316 + $0x8] sm:$0xff]
        %v426 = vld [vmem:[%s316 + $0x10] sm:$0xff]
        %v427 = vld [vmem:[%s316 + $0x18] sm:$0xff]
        %v428 = vpack.c.bf16 %v425, %v424
        %v429 = vpack.c.bf16 %v427, %v426
        %v430 = vld [vmem:[%s357] sm:$0x1]
        %v432 = vperm.slane %v430, 0
        %v435 = vsel %vm379, %v423, 0
        %437 = vmatpush.bf16.msra.mxu0 0
        %438 = vmatpush.bf16.msra.mxu0 0
        %439 = vmatpush.bf16.msra.mxu0 0
        %440 = vmatpush.bf16.msra.mxu0 0
        %441 = vmatpush.bf16.msra.mxu0 0
        %442 = vmatpush.bf16.msra.mxu0 0
        %443 = vmatpush.bf16.msra.mxu0 %v429
        %444 = vmatpush.bf16.msra.mxu0 %v428
        %445 = vmatmul.bf16.gmra.mxu0 %v435
        %v446 = vpop.f32.mrf.mxu0
        %v447 = vadd.f32 %v432, %v446
        %v448 = vpop.f32.mrf.mxu0
        %v449 = vadd.f32 %v432, %v448
        %450 = vdwg.mxu0
        %v451 = vpack.c.bf16 %v449, %v447
        %v453 = vsel %vm379, %v451, 0
        %455 = vmatpush.bf16.xpose.msra.mxu0 0
        %456 = vmatpush.bf16.xpose.msra.mxu0 0
        %457 = vmatpush.bf16.xpose.msra.mxu0 0
        %458 = vmatpush.bf16.xpose.msra.mxu0 0
        %459 = vmatpush.bf16.xpose.msra.mxu0 0
        %460 = vmatpush.bf16.xpose.msra.mxu0 0
        %461 = vmatpush.bf16.xpose.msra.mxu0 0
        %462 = vmatpush.bf16.xpose.msra.mxu0 %v453
        %463 = vmatmul.bf16.gmra.mxu0 %v453
        %v464 = vpop.f32.mrf.mxu0
        %v465 = vadd.f32 0.0, %v464
        %v466 = vpop.f32.mrf.mxu0
        %v467 = vadd.f32 0.0, %v466
        %468 = vdwg.mxu0
        %vm469 = vcmp.ge.f32.partialorder %v465, 0.0
        %vm470 = vcmp.ge.f32.partialorder %v467, 0.0
        %v471 = vmul.f32 %v465, 0.2
        %v472 = vmul.f32 %v467, 0.2
        %v473 = vsel %vm469, %v465, %v471
        %v474 = vsel %vm470, %v467, %v472
        %vm475 = vcmp.gt.f32.partialorder %v368, 0.0
        %vm476 = vcmp.gt.f32.partialorder %v369, 0.0
        %v477 = vsel %vm475, %v473, -1e+30
        %v478 = vsel %vm476, %v474, -1e+30
        %v479 = vsel %vm403, %v477, -inf
        %480 = vmax.xlane.f32.xlu0 %v479
        %v481 = vpop.xlane.xlu0 %480
        %v482 = vsel %vm403, %v478, -inf
        %483 = vmax.xlane.f32.xlu0 %v482
        %v484 = vpop.xlane.xlu0 %483
        %v485 = vsub.f32 %v477, %v481
        %v486 = vsub.f32 %v478, %v484
        %v487 = vmul.f32 %v485, 1.442695
        %v488 = vpow.pop %v487
        %v489 = vmul.f32 %v486, 1.442695
        %v490 = vpow.pop %v489
        %v491 = vsel %vm403, %v488, 0.0
        %492 = vadd.xlane.f32.xlu0 %v491
        %v493 = vpop.xlane.xlu0 %492
        %v494 = vsel %vm403, %v490, 0.0
        %495 = vadd.xlane.f32.xlu0 %v494
        %v496 = vpop.xlane.xlu0 %495
        %v497 = vmax.f32 %v493, 1e-20
        %v498 = vmax.f32 %v496, 1e-20
        %v499 = vrcp.pop %v497
        %v500 = vrcp.pop %v498
        %v501 = vmul.f32 %v488, %v499
        %v502 = vmul.f32 %v490, %v500
        %v503 = vpack.c.bf16 %v502, %v501
        %v505 = vsel %vm403, %v503, 0
        %507 = vmatpush.bf16.msra.mxu0 0
        %508 = vmatpush.bf16.msra.mxu0 0
        %509 = vmatpush.bf16.msra.mxu0 0
        %510 = vmatpush.bf16.msra.mxu0 0
        %511 = vmatpush.bf16.msra.mxu0 0
        %512 = vmatpush.bf16.msra.mxu0 0
        %513 = vmatpush.bf16.msra.mxu0 0
        %514 = vmatpush.bf16.msra.mxu0 %v451
        %515 = vmatmul.bf16.gmra.mxu0 %v505
        %v516 = vpop.f32.mrf.mxu0
        %v517 = vadd.f32 0.0, %v516
        %v518 = vpop.f32.mrf.mxu0
        %v519 = vadd.f32 0.0, %v518
        %520 = vdwg.mxu0
        %p521 = scmp.lt.s32.totalorder %s20, 1
        // Predicated region
        $region65: #{tpu_custom_call.1} parent=43 // pred_check
          %p522 = pneg %p521
        $region66: #{tpu_custom_call.1} parent=43 // pred_check_branch
          %524 = sbr.rel (%p522) target = $region68
        $region67: #{tpu_custom_call.1} parent=43 // pred_region
          %525 = vst.msk [vmem:[#allocation2] sm:$0xff] %vm379, %v517
          %526 = vst.msk [vmem:[#allocation2 + $0x8] sm:$0xff] %vm379, %v519
        $region68: #{tpu_custom_call.1} parent=43 // pred_fallthru
          _
        %p527 = scmp.eq.s32.totalorder %s20, 1
        // Predicated region
        $region69: #{tpu_custom_call.1} parent=43 // pred_check
          %p528 = pneg %p527
        $region70: #{tpu_custom_call.1} parent=43 // pred_check_branch
          %530 = sbr.rel (%p528) target = $region72
        $region71: #{tpu_custom_call.1} parent=43 // pred_region
          %531 = vst.msk [vmem:[#allocation10] sm:$0xff] %vm379, %v517
          %532 = vst.msk [vmem:[#allocation10 + $0x8] sm:$0xff] %vm379, %v519
          %535 = vrot.lane.b32.xlu0 %v517, 32
          %v536 = vpop.permute.xlu0 %535
          %537 = vrot.lane.b32.xlu0 %v519, 32
          %v538 = vpop.permute.xlu0 %537
          %vm541 = vcmask 523520
          %542 = vst.msk [vmem:[#allocation10] sm:$0xff] %vm541, %v536
          %543 = vst.msk [vmem:[#allocation10 + $0x8] sm:$0xff] %vm541, %v538
        $region72: #{tpu_custom_call.1} parent=43 // pred_fallthru
          _
        // Predicated region
        $region73: #{tpu_custom_call.1} parent=43 // pred_check
          %p544 = pneg %p179
        $region74: #{tpu_custom_call.1} parent=43 // pred_check_branch
          %546 = sbr.rel (%p544) target = $region76
        $region75: #{tpu_custom_call.1} parent=43 // pred_region
          %548 = vsyncadd [#allocation5], 0
          %s549 = sshll.u32 [#allocation10], 4
          %s550 = int_to_ptr.vmem [resolvable:$true] %s549
          %s551 = sshll.u32 %s6, 4
          %s552 = int_to_ptr.hbm [resolvable:$true] %s551
          %557 = dma.vmem_to_hbm [thread:$0]  %s550, 256, %s552, [#allocation5], 128, 128, 8
        $region76: #{tpu_custom_call.1} parent=43 // pred_fallthru
          _
        // Predicated region
        $region77: #{tpu_custom_call.1} parent=43 // pred_check
          %p558 = pneg %p179
        $region78: #{tpu_custom_call.1} parent=43 // pred_check_branch
          %560 = sbr.rel (%p558) target = $region80
        $region79: #{tpu_custom_call.1} parent=43 // pred_region
          %562 = dma.done [#allocation5], 256
        $region80: #{tpu_custom_call.1} parent=43 // pred_fallthru
          _
      $region44: #{tpu_custom_call.1} parent=5 // pred_fallthru
        _
      %p563 = scmp.le.s32.totalorder 2, %s15
      // Predicated region
      $region81: #{tpu_custom_call.1} parent=5 // pred_check
        %p564 = pneg %p563
      $region82: #{tpu_custom_call.1} parent=5 // pred_check_branch
        %566 = sbr.rel (%p564) target = $region84
      $region83: #{tpu_custom_call.1} parent=5 // pred_region
        %s567 = ssub.s32 %s15, 2
      $region84: #{tpu_custom_call.1} parent=5 // pred_fallthru
        _
    $region6: #{tpu_custom_call.1} parent=1 // loop_footer
      %s19 = sadd.s32 1, %s15
    $region7: #{tpu_custom_call.1} parent=1 // loop_footer_branch
      %14 = sbr.rel target = $region3
    $region8: #{tpu_custom_call.1} parent=1 // loop_exit
      _
    %568 = vsyncpa [#allocation4], 1
    %s569 = scalar_lea.sflag [#allocation4], 1
    %570 = vsyncpa %s569, 1
    %571 = vsyncpa [#allocation7], 1
    %572 = vsyncpa [#allocation5], 1
    %s573 = scalar_lea.sflag [#allocation5], 1
    %574 = vsyncpa %s573, 1

</llo_original>
